<compile_context>
chip_gen: v5e
topology: v5e:2x2
jax: 0.10.0
libtpu: 0.0.40
codegen_flags: <defaults>
</compile_context>

<pallas_src>
import functools

import jax
import jax.numpy as jnp
import numpy as np
from jax.experimental import pallas as pl
from jax.experimental.pallas import tpu as pltpu


# ---------------------------------------------------------------------------
# Hadamard helpers (Sylvester ordering; H is symmetric, H @ H = n * I)
# ---------------------------------------------------------------------------
def hadamard_matrix(n: int) -> jnp.ndarray:
    assert n & (n - 1) == 0, f"had_block_size must be a power of 2, got {n}"
    i = jnp.arange(n, dtype=jnp.int32)[:, None]
    j = jnp.arange(n, dtype=jnp.int32)[None, :]
    bits = jnp.bitwise_and(i, j)
    popcount = jnp.zeros_like(bits)
    for k in range(int(np.log2(n))):
        popcount = popcount + ((bits >> k) & 1)
    return jnp.where(popcount % 2 == 0, 1.0, -1.0).astype(jnp.float32)


def blockwise_hadamard(x: jnp.ndarray, h_scaled: jnp.ndarray) -> jnp.ndarray:
    """Plain-JAX blockwise Hadamard transform over the last dim (init/reference)."""
    hb = h_scaled.shape[0]
    shape = x.shape
    return (x.reshape(-1, hb) @ h_scaled).reshape(shape)


def fold_input_hadamard_into_weight(weight: jnp.ndarray,
                                    h_scaled: jnp.ndarray) -> jnp.ndarray:
    """One-time init glue: fold the forward-pass input Hadamard into the weight.

    Since H is symmetric:  (x @ H_blockdiag) @ W^T == x @ (W @ H_blockdiag)^T.
    We apply the *scaled* H blockwise along in_features of W (exactly the same
    scaled transform the module would apply to x at runtime — the 1/sqrt(hb)
    scale appears exactly once) and pre-transpose to (in_features, out_features)
    so the kernel is a plain lane-dense GEMM with no in-kernel transpose.
    """
    n_out, k_in = weight.shape
    hb = h_scaled.shape[0]
    assert k_in % hb == 0, (k_in, hb)
    w_folded = (weight.reshape(n_out, k_in // hb, hb) @ h_scaled).reshape(n_out, k_in)
    return jnp.transpose(w_folded)  # (in_features, out_features), materialized once


# ---------------------------------------------------------------------------
# Pallas kernel: tiled GEMM + bias (Hadamard already folded into the weight)
# ---------------------------------------------------------------------------
def _fused_linear_kernel(x_ref, w_ref, b_ref, o_ref, acc_ref):
    k = pl.program_id(2)

    @pl.when(k == 0)
    def _():
        acc_ref[...] = jnp.zeros_like(acc_ref)

    # (tm, tk) @ (tk, tn) — single MXU matmul per step, f32 accumulation.
    acc_ref[...] += jnp.dot(x_ref[...], w_ref[...],
                            preferred_element_type=jnp.float32)

    @pl.when(k == pl.num_programs(2) - 1)
    def _():
        o_ref[...] = (acc_ref[...] + b_ref[...]).astype(o_ref.dtype)


def _pick_tile(dim: int, cap: int, align: int) -> int:
    """Largest tile <= cap that divides dim and is a multiple of `align`
    (or the full dim if dim <= cap / no aligned divisor exists)."""
    if dim <= cap:
        return dim
    t = (cap // align) * align
    while t >= align:
        if dim % t == 0:
            return t
        t -= align
    # TODO(synk): pad awkward dims instead of falling back to a full-dim block.
    return dim


def noisy_hadamard_linear(x, w_fwd, bias, *, tm=None, tn=None, tk=None,
                          compute_dtype=None):
    """Forward pass. `w_fwd` is the Hadamard-folded, pre-transposed weight
    with shape (in_features, out_features); `bias` has shape (out_features,)."""
    orig_shape = x.shape
    in_features, out_features = w_fwd.shape
    assert orig_shape[-1] == in_features, (orig_shape, w_fwd.shape)

    x2 = x.reshape(-1, in_features)
    M = x2.shape[0]
    out_dtype = x.dtype

    cdtype = x.dtype if compute_dtype is None else compute_dtype
    x2 = x2.astype(cdtype)
    w = w_fwd.astype(cdtype)
    b = bias.reshape(1, out_features).astype(jnp.float32)

    # VMEM-budgeted tiles: 512-caps keep double-buffered tiles + f32 acc well
    # under the scoped VMEM limit on v5e/v6e/v7x, N/K are 256-aligned when
    # possible (v6e/v7x MXU width), and M/N tiling exposes parallel grid axes.
    tm = _pick_tile(M, 512, 8) if tm is None else tm
    tn = _pick_tile(out_features, 512, 128) if tn is None else tn
    tk = _pick_tile(in_features, 512, 128) if tk is None else tk
    assert M % tm == 0 and out_features % tn == 0 and in_features % tk == 0

    grid = (M // tm, out_features // tn, in_features // tk)

    itemsize = jnp.dtype(cdtype).itemsize
    out_itemsize = jnp.dtype(out_dtype).itemsize
    est = (2 * (tm * tk + tk * tn) * itemsize      # double-buffered x / w tiles
           + 2 * tm * tn * out_itemsize            # double-buffered out tile
           + 2 * tn * 4                            # bias tile
           + tm * tn * 4)                          # f32 accumulator scratch
    vmem_limit = int(min(max(2 * est, 32 * 1024 * 1024), 64 * 1024 * 1024))

    out = pl.pallas_call(
        _fused_linear_kernel,
        out_shape=jax.ShapeDtypeStruct((M, out_features), out_dtype),
        grid_spec=pltpu.PrefetchScalarGridSpec(
            num_scalar_prefetch=0,
            grid=grid,
            in_specs=[
                pl.BlockSpec((tm, tk), lambda i, j, k: (i, k)),   # x block
                pl.BlockSpec((tk, tn), lambda i, j, k: (k, j)),   # folded W^T block
                pl.BlockSpec((1, tn), lambda i, j, k: (0, j)),    # bias block
            ],
            out_specs=pl.BlockSpec((tm, tn), lambda i, j, k: (i, j)),
            scratch_shapes=[pltpu.VMEM((tm, tn), jnp.float32)],
        ),
        compiler_params=pltpu.CompilerParams(
            dimension_semantics=("parallel", "parallel", "arbitrary"),
            vmem_limit_bytes=vmem_limit,
        ),
    )(x2, w, b)

    return out.reshape(*orig_shape[:-1], out_features)


# ---------------------------------------------------------------------------
# Module-equivalent: deterministic parameter construction (init-time glue)
# ---------------------------------------------------------------------------
def build_noisy_hadamard_linear_params(key, in_features, out_features,
                                       had_block_size, noise_level):
    assert in_features % had_block_size == 0
    k_w, k_b, k_n = jax.random.split(key, 3)

    # "given" weight / bias (as if passed to the PyTorch module __init__)
    weight = jax.random.normal(k_w, (out_features, in_features), jnp.float32) * 0.02
    bias = jax.random.normal(k_b, (out_features,), jnp.float32) * 0.01

    scale = 1.0 / float(had_block_size) ** 0.5
    h_scaled = hadamard_matrix(had_block_size) * scale

    # init-time blockwise Hadamard of the weight (over in_features blocks)
    w_t = blockwise_hadamard(
        weight.reshape(out_features, in_features // had_block_size, had_block_size),
        h_scaled,
    ).reshape(out_features, in_features)

    # additive Gaussian noise: randn * ||W|| / sqrt(numel) * noise_level
    noise = jax.random.normal(k_n, w_t.shape, jnp.float32)
    w_noisy = w_t + noise * (jnp.linalg.norm(w_t) / np.sqrt(w_t.size)) * noise_level

    return w_noisy, bias, h_scaled


if __name__ == "__main__":
    # Small shapes consistent with the module:
    #   input (batch=2, seq=8, in_features=256), had_block_size=128,
    #   out_features=128  ->  flattened M = 16.
    batch, seq = 2, 8
    in_features, out_features = 256, 128
    had_block_size = 128
    noise_level = 0.5

    key = jax.random.PRNGKey(0)
    k_params, k_x = jax.random.split(key)

    w_noisy, bias, h_scaled = build_noisy_hadamard_linear_params(
        k_params, in_features, out_features, had_block_size, noise_level
    )
    # One-time init-time fold of the forward-pass input Hadamard into the weight
    # (this is the *second*, intentional blockwise transform of w_noisy).
    w_fwd = jax.block_until_ready(fold_input_hadamard_into_weight(w_noisy, h_scaled))

    x = jax.random.normal(k_x, (batch, seq, in_features), jnp.float32)

    fwd = jax.jit(functools.partial(noisy_hadamard_linear))
    y = fwd(x, w_fwd, bias)
    y = jax.block_until_ready(y)

    # Pure-JAX reference of the original module's forward pass.
    x_had = blockwise_hadamard(x.reshape(-1, had_block_size), h_scaled)
    x_had = x_had.reshape(batch, seq, in_features)
    y_ref = x_had @ w_noisy.T + bias

    assert y.shape == (batch, seq, out_features), y.shape
    np.testing.assert_allclose(np.asarray(y), np.asarray(y_ref), rtol=1e-4, atol=1e-4)

    print("KERNEL_OK")
</pallas_src>

<mosaic_0001>
module attributes {stable_mosaic.version = 11 : i64} {
  func.func @_fused_linear_kernel(%arg0: i32, %arg1: i32, %arg2: i32, %arg3: memref<16x256xf32, #tpu.memory_space<vmem>>, %arg4: memref<256x128xf32, #tpu.memory_space<vmem>>, %arg5: memref<1x128xf32, #tpu.memory_space<vmem>>, %arg6: memref<16x128xf32, #tpu.memory_space<vmem>>, %arg7: memref<16x128xf32, #tpu.memory_space<vmem>>) attributes {dimension_semantics = [#tpu.dimension_semantics<parallel>, #tpu.dimension_semantics<parallel>, #tpu.dimension_semantics<arbitrary>], iteration_bounds = array<i64: 1, 1, 1>, scalar_prefetch = 0 : i64, scratch_operands = 1 : i64, tpu.core_type = #tpu.core_type<tc>, window_params = [{transform_indices = @transform_0, window_bounds = array<i64: 16, 256>}, {transform_indices = @transform_1, window_bounds = array<i64: 256, 128>}, {transform_indices = @transform_2, window_bounds = array<i64: 1, 128>}, {transform_indices = @transform_3, window_bounds = array<i64: 16, 128>}]} {
    %c0_i32 = arith.constant 0 : i32
    %0 = arith.cmpi eq, %arg2, %c0_i32 : i32
    %1 = arith.extui %0 : i1 to i32
    %c0_i32_0 = arith.constant 0 : i32
    %2 = arith.cmpi ne, %1, %c0_i32_0 : i32
    scf.if %2 {
      %cst_10 = arith.constant 0.000000e+00 : f32
      %12 = vector.broadcast %cst_10 : f32 to vector<16x128xf32>
      %c0_11 = arith.constant 0 : index
      %c0_12 = arith.constant 0 : index
      %13 = vector.load %arg7[%c0_11, %c0_12] : memref<16x128xf32, #tpu.memory_space<vmem>>, vector<16x128xf32>
      tpu.vector_store %arg7[%c0_11, %c0_12], %12 {strides = array<i32>} : memref<16x128xf32, #tpu.memory_space<vmem>>, vector<16x128xf32>,
    } else {
    }
    %c0 = arith.constant 0 : index
    %c0_1 = arith.constant 0 : index
    %3 = vector.load %arg7[%c0, %c0_1] : memref<16x128xf32, #tpu.memory_space<vmem>>, vector<16x128xf32>
    %c0_2 = arith.constant 0 : index
    %c0_3 = arith.constant 0 : index
    %4 = vector.load %arg3[%c0_2, %c0_3] : memref<16x256xf32, #tpu.memory_space<vmem>>, vector<16x256xf32>
    %c0_4 = arith.constant 0 : index
    %c0_5 = arith.constant 0 : index
    %5 = vector.load %arg4[%c0_4, %c0_5] : memref<256x128xf32, #tpu.memory_space<vmem>>, vector<256x128xf32>
    %cst = arith.constant dense<0.000000e+00> : vector<16x128xf32>
    %6 = tpu.matmul %4, %5, %cst {dimension_numbers = #tpu.dot_dimension_numbers<[1], [0], [0], [1], [0, 0, 1, 1], [], []>} : vector<16x256xf32>, vector<256x128xf32>, vector<16x128xf32> -> vector<16x128xf32>
    %7 = arith.addf %3, %6 : vector<16x128xf32>
    %c0_6 = arith.constant 0 : index
    %c0_7 = arith.constant 0 : index
    %8 = vector.load %arg7[%c0_6, %c0_7] : memref<16x128xf32, #tpu.memory_space<vmem>>, vector<16x128xf32>
    tpu.vector_store %arg7[%c0_6, %c0_7], %7 {strides = array<i32>} : memref<16x128xf32, #tpu.memory_space<vmem>>, vector<16x128xf32>,
    %c0_i32_8 = arith.constant 0 : i32
    %9 = arith.cmpi eq, %arg2, %c0_i32_8 : i32
    %10 = arith.extui %9 : i1 to i32
    %c0_i32_9 = arith.constant 0 : i32
    %11 = arith.cmpi ne, %10, %c0_i32_9 : i32
    scf.if %11 {
      %c0_10 = arith.constant 0 : index
      %c0_11 = arith.constant 0 : index
      %12 = vector.load %arg7[%c0_10, %c0_11] : memref<16x128xf32, #tpu.memory_space<vmem>>, vector<16x128xf32>
      %c0_12 = arith.constant 0 : index
      %c0_13 = arith.constant 0 : index
      %13 = vector.load %arg5[%c0_12, %c0_13] : memref<1x128xf32, #tpu.memory_space<vmem>>, vector<1x128xf32>
      %14 = vector.broadcast %13 : vector<1x128xf32> to vector<16x128xf32>
      %15 = arith.addf %12, %14 : vector<16x128xf32>
      %c0_14 = arith.constant 0 : index
      %c0_15 = arith.constant 0 : index
      %16 = vector.load %arg6[%c0_14, %c0_15] : memref<16x128xf32, #tpu.memory_space<vmem>>, vector<16x128xf32>
      tpu.vector_store %arg6[%c0_14, %c0_15], %15 {strides = array<i32>} : memref<16x128xf32, #tpu.memory_space<vmem>>, vector<16x128xf32>,
    } else {
    }
    return
  }
  func.func @transform_0(%arg0: i32, %arg1: i32, %arg2: i32) -> (i32, i32) {
    %c0_i32 = arith.constant 0 : i32
    return %arg0, %arg2 : i32, i32
  }
  func.func @transform_1(%arg0: i32, %arg1: i32, %arg2: i32) -> (i32, i32) {
    %c0_i32 = arith.constant 0 : i32
    return %arg2, %arg1 : i32, i32
  }
  func.func @transform_2(%arg0: i32, %arg1: i32, %arg2: i32) -> (i32, i32) {
    %c0_i32 = arith.constant 0 : i32
    %c0_i32_0 = arith.constant 0 : i32
    return %c0_i32, %arg1 : i32, i32
  }
  func.func @transform_3(%arg0: i32, %arg1: i32, %arg2: i32) -> (i32, i32) {
    %c0_i32 = arith.constant 0 : i32
    return %arg0, %arg1 : i32, i32
  }
}

</mosaic_0001>

<llo_original>
// kernel: noisy_hadamard_linear.1
$region0: #{noisy_hadamard_linear.1}
  #allocation0 [shape = 'u32[]', space=smem, size = 0x4, offset = 0x4, fixed_abs, tag = 'smem constant byte address 0x4 - core index']
  #allocation1 [shape = 'u32[72,128]{1,0:T(1,128)}', space=vmem, size = 0x9000, scoped, tag = 'internal scratch']
  #allocation2 [shape = 'f32[16,128]{1,0:T(8,128)}', space=vmem, size = 0x2000, scoped, tag = 'scratch operand']
  %s0 = inlined_call_operand.hbm [shape: f32[16,256], index: 0, kind: input, shape index: {}]
  %s1 = inlined_call_operand.hbm [shape: f32[256,128], index: 1, kind: input, shape index: {}]
  %s2 = inlined_call_operand.vmem [shape: f32[1,128], index: 2, kind: input, shape index: {}]
  %s3 = inlined_call_operand.hbm [shape: f32[16,128], index: 3, kind: output, shape index: {}]
  %s4 = sld [smem:[#allocation0]]
  $region38: #{noisy_hadamard_linear.1} parent=0
    _
  %s6 = ssub.s32 1, %s4
  %s7 = scalar_select 0, %s6, %s4
  $region1: #{noisy_hadamard_linear.1} parent=0
    #allocation3 [shape = 'u8[16384]{0}', space=vmem, size = 0x4000, scoped, tag = 'input window, operand 0, single buffered']
    #allocation4 [shape = 's32[1]{0}', space=sflag, size = 0x4, scoped, tag = 'scoped memory for noisy_hadamard_linear.1']
    #allocation5 [shape = 's32[1]{0}', space=sflag, size = 0x4, scoped, tag = 'scoped memory for noisy_hadamard_linear.1']
    #allocation6 [shape = 'u8[131072]{0}', space=vmem, size = 0x20000, scoped, tag = 'input window, operand 1, single buffered']
    #allocation7 [shape = 's32[1]{0}', space=sflag, size = 0x4, scoped, tag = 'scoped memory for noisy_hadamard_linear.1']
    #allocation8 [shape = 'u8[8192]{0}', space=vmem, size = 0x2000, scoped, tag = 'output window, operand 0, single buffered']
    %8 = vsyncpa [#allocation4], 0
    %9 = vsyncpa [#allocation7], 0
    %10 = vsyncpa [#allocation5], 0
    // Predicated region
    $region2: #{noisy_hadamard_linear.1} parent=1 // pred_check
      _
    $region3: #{noisy_hadamard_linear.1} parent=1 // pred_check_branch
      %12 = sbr.rel (0) target = $region5
    $region4: #{noisy_hadamard_linear.1} parent=1 // pred_region
      %14 = vsyncadd [#allocation4], 0
      %s15 = sshll.u32 %s0, 4
      %s16 = int_to_ptr.hbm [resolvable:$true] %s15
      %s17 = sshll.u32 [#allocation3], 4
      %s18 = int_to_ptr.vmem [resolvable:$true] %s17
      %23 = dma.hbm_to_vmem [thread:$0]  %s16, 512, %s18, [#allocation4], 256, 256, 16
    $region5: #{noisy_hadamard_linear.1} parent=1 // pred_fallthru
      _
    // Predicated region
    $region6: #{noisy_hadamard_linear.1} parent=1 // pred_check
      _
    $region7: #{noisy_hadamard_linear.1} parent=1 // pred_check_branch
      %25 = sbr.rel (0) target = $region9
    $region8: #{noisy_hadamard_linear.1} parent=1 // pred_region
      %27 = vsyncadd [#allocation7], 0
      %s28 = sshll.u32 %s1, 4
      %s29 = int_to_ptr.hbm [resolvable:$true] %s28
      %s30 = sshll.u32 [#allocation6], 4
      %s31 = int_to_ptr.vmem [resolvable:$true] %s30
      %36 = dma.hbm_to_vmem [thread:$0]  %s29, 4096, %s31, [#allocation7], 128, 128, 8
    $region9: #{noisy_hadamard_linear.1} parent=1 // pred_fallthru
      _
    // Predicated region
    $region10: #{noisy_hadamard_linear.1} parent=1 // pred_check
      _
    $region11: #{noisy_hadamard_linear.1} parent=1 // pred_check_branch
      %38 = sbr.rel (0) target = $region13
    $region12: #{noisy_hadamard_linear.1} parent=1 // pred_region
      _
    $region13: #{noisy_hadamard_linear.1} parent=1 // pred_fallthru
      _
    // Predicated region
    $region14: #{noisy_hadamard_linear.1} parent=1 // pred_check
      _
    $region15: #{noisy_hadamard_linear.1} parent=1 // pred_check_branch
      %40 = sbr.rel (0) target = $region17
    $region16: #{noisy_hadamard_linear.1} parent=1 // pred_region
      %42 = dma.done [#allocation4], 512
    $region17: #{noisy_hadamard_linear.1} parent=1 // pred_fallthru
      _
    // Predicated region
    $region18: #{noisy_hadamard_linear.1} parent=1 // pred_check
      _
    $region19: #{noisy_hadamard_linear.1} parent=1 // pred_check_branch
      %44 = sbr.rel (0) target = $region21
    $region20: #{noisy_hadamard_linear.1} parent=1 // pred_region
      %46 = dma.done [#allocation7], 4096
    $region21: #{noisy_hadamard_linear.1} parent=1 // pred_fallthru
      _
    %p47 = scmp.eq.s32.totalorder 0, 0
    // Predicated region
    $region22: #{noisy_hadamard_linear.1} parent=1 // pred_check
      %p48 = pneg %p47
    $region23: #{noisy_hadamard_linear.1} parent=1 // pred_check_branch
      %50 = sbr.rel (%p48) target = $region25
    $region24: #{noisy_hadamard_linear.1} parent=1 // pred_region
      %51 = vst [vmem:[#allocation2] sm:$0xff] 0.0
      %52 = vst [vmem:[#allocation2 + $0x8] sm:$0xff] 0.0
    $region25: #{noisy_hadamard_linear.1} parent=1 // pred_fallthru
      _
    %v53 = vld [vmem:[#allocation2] sm:$0xff]
    %v54 = vld [vmem:[#allocation2 + $0x8] sm:$0xff]
    %v55 = vld [vmem:[#allocation3] sm:$0xff]
    %v56 = vld [vmem:[#allocation3 + $0x8] sm:$0xff]
    %v57 = vld [vmem:[#allocation3 + $0x10] sm:$0xff]
    %v58 = vld [vmem:[#allocation3 + $0x18] sm:$0xff]
    %v59 = vld [vmem:[#allocation6] sm:$0xff]
    %v60 = vld [vmem:[#allocation6 + $0x8] sm:$0xff]
    %v61 = vld [vmem:[#allocation6 + $0x10] sm:$0xff]
    %v62 = vld [vmem:[#allocation6 + $0x18] sm:$0xff]
    %v63 = vld [vmem:[#allocation6 + $0x20] sm:$0xff]
    %v64 = vld [vmem:[#allocation6 + $0x28] sm:$0xff]
    %v65 = vld [vmem:[#allocation6 + $0x30] sm:$0xff]
    %v66 = vld [vmem:[#allocation6 + $0x38] sm:$0xff]
    %v67 = vld [vmem:[#allocation6 + $0x40] sm:$0xff]
    %v68 = vld [vmem:[#allocation6 + $0x48] sm:$0xff]
    %v69 = vld [vmem:[#allocation6 + $0x50] sm:$0xff]
    %v70 = vld [vmem:[#allocation6 + $0x58] sm:$0xff]
    %v71 = vld [vmem:[#allocation6 + $0x60] sm:$0xff]
    %v72 = vld [vmem:[#allocation6 + $0x68] sm:$0xff]
    %v73 = vld [vmem:[#allocation6 + $0x70] sm:$0xff]
    %v74 = vld [vmem:[#allocation6 + $0x78] sm:$0xff]
    %v75 = vld [vmem:[#allocation6 + $0x80] sm:$0xff]
    %v76 = vld [vmem:[#allocation6 + $0x88] sm:$0xff]
    %v77 = vld [vmem:[#allocation6 + $0x90] sm:$0xff]
    %v78 = vld [vmem:[#allocation6 + $0x98] sm:$0xff]
    %v79 = vld [vmem:[#allocation6 + $0xa0] sm:$0xff]
    %v80 = vld [vmem:[#allocation6 + $0xa8] sm:$0xff]
    %v81 = vld [vmem:[#allocation6 + $0xb0] sm:$0xff]
    %v82 = vld [vmem:[#allocation6 + $0xb8] sm:$0xff]
    %v83 = vld [vmem:[#allocation6 + $0xc0] sm:$0xff]
    %v84 = vld [vmem:[#allocation6 + $0xc8] sm:$0xff]
    %v85 = vld [vmem:[#allocation6 + $0xd0] sm:$0xff]
    %v86 = vld [vmem:[#allocation6 + $0xd8] sm:$0xff]
    %v87 = vld [vmem:[#allocation6 + $0xe0] sm:$0xff]
    %v88 = vld [vmem:[#allocation6 + $0xe8] sm:$0xff]
    %v89 = vld [vmem:[#allocation6 + $0xf0] sm:$0xff]
    %v90 = vld [vmem:[#allocation6 + $0xf8] sm:$0xff]
    %91 = vmatpush.msra.mxu0 %v74
    %92 = vmatpush.msra.mxu0 %v73
    %93 = vmatpush.msra.mxu0 %v72
    %94 = vmatpush.msra.mxu0 %v71
    %95 = vmatpush.msra.mxu0 %v70
    %96 = vmatpush.msra.mxu0 %v69
    %97 = vmatpush.msra.mxu0 %v68
    %98 = vmatpush.msra.mxu0 %v67
    %99 = vmatpush.msra.mxu0 %v66
    %100 = vmatpush.msra.mxu0 %v65
    %101 = vmatpush.msra.mxu0 %v64
    %102 = vmatpush.msra.mxu0 %v63
    %103 = vmatpush.msra.mxu0 %v62
    %104 = vmatpush.msra.mxu0 %v61
    %105 = vmatpush.msra.mxu0 %v60
    %106 = vmatpush.msra.mxu0 %v59
    %107 = vmatmul.f32.gmra.mxu0 %v55
    %v108 = vpop.f32.mrf.mxu0
    %v109 = vadd.f32 0.0, %v108
    %110 = vmatmul.f32.gmra.mxu0 %v57
    %v111 = vpop.f32.mrf.mxu0
    %v112 = vadd.f32 0.0, %v111
    %113 = vdwg.mxu0
    %114 = vmatpush.msra.mxu0 %v90
    %115 = vmatpush.msra.mxu0 %v89
    %116 = vmatpush.msra.mxu0 %v88
    %117 = vmatpush.msra.mxu0 %v87
    %118 = vmatpush.msra.mxu0 %v86
    %119 = vmatpush.msra.mxu0 %v85
    %120 = vmatpush.msra.mxu0 %v84
    %121 = vmatpush.msra.mxu0 %v83
    %122 = vmatpush.msra.mxu0 %v82
    %123 = vmatpush.msra.mxu0 %v81
    %124 = vmatpush.msra.mxu0 %v80
    %125 = vmatpush.msra.mxu0 %v79
    %126 = vmatpush.msra.mxu0 %v78
    %127 = vmatpush.msra.mxu0 %v77
    %128 = vmatpush.msra.mxu0 %v76
    %129 = vmatpush.msra.mxu0 %v75
    %130 = vmatmul.f32.gmra.mxu0 %v56
    %v131 = vpop.f32.mrf.mxu0
    %v132 = vadd.f32 %v109, %v131
    %133 = vmatmul.f32.gmra.mxu0 %v58
    %v134 = vpop.f32.mrf.mxu0
    %v135 = vadd.f32 %v112, %v134
    %136 = vdwg.mxu0
    %v137 = vadd.f32 %v53, %v132
    %v138 = vadd.f32 %v54, %v135
    %139 = vst [vmem:[#allocation2] sm:$0xff] %v137
    %140 = vst [vmem:[#allocation2 + $0x8] sm:$0xff] %v138
    // Predicated region
    $region26: #{noisy_hadamard_linear.1} parent=1 // pred_check
      %p141 = pneg %p47
    $region27: #{noisy_hadamard_linear.1} parent=1 // pred_check_branch
      %143 = sbr.rel (%p141) target = $region29
    $region28: #{noisy_hadamard_linear.1} parent=1 // pred_region
      %v144 = vld [vmem:[#allocation2] sm:$0xff]
      %v145 = vld [vmem:[#allocation2 + $0x8] sm:$0xff]
      %v146 = vld [vmem:[%s2] sm:$0x1]
      %v148 = vperm.slane %v146, 0
      %v150 = vadd.f32 %v144, %v148
      %v151 = vadd.f32 %v145, %v148
      %152 = vst [vmem:[#allocation8] sm:$0xff] %v150
      %153 = vst [vmem:[#allocation8 + $0x8] sm:$0xff] %v151
    $region29: #{noisy_hadamard_linear.1} parent=1 // pred_fallthru
      _
    // Predicated region
    $region30: #{noisy_hadamard_linear.1} parent=1 // pred_check
      _
    $region31: #{noisy_hadamard_linear.1} parent=1 // pred_check_branch
      %155 = sbr.rel (0) target = $region33
    $region32: #{noisy_hadamard_linear.1} parent=1 // pred_region
      %157 = vsyncadd [#allocation5], 0
      %s158 = sshll.u32 [#allocation8], 4
      %s159 = int_to_ptr.vmem [resolvable:$true] %s158
      %s160 = sshll.u32 %s3, 4
      %s161 = int_to_ptr.hbm [resolvable:$true] %s160
      %166 = dma.vmem_to_hbm [thread:$0]  %s159, 256, %s161, [#allocation5], 128, 128, 8
    $region33: #{noisy_hadamard_linear.1} parent=1 // pred_fallthru
      _
    // Predicated region
    $region34: #{noisy_hadamard_linear.1} parent=1 // pred_check
      _
    $region35: #{noisy_hadamard_linear.1} parent=1 // pred_check_branch
      %168 = sbr.rel (0) target = $region37
    $region36: #{noisy_hadamard_linear.1} parent=1 // pred_region
      %170 = dma.done [#allocation5], 256
    $region37: #{noisy_hadamard_linear.1} parent=1 // pred_fallthru
      _
    %171 = vsyncpa [#allocation4], 1
    %172 = vsyncpa [#allocation7], 1
    %173 = vsyncpa [#allocation5], 1

</llo_original>
